<compile_context>
chip_gen: v6e
topology: v6e:2x2x1
jax: 0.10.0
libtpu: 0.0.40
codegen_flags: <defaults>
</compile_context>

<pallas_src>
import functools

import jax
import jax.numpy as jnp
from jax import lax
from jax.experimental import pallas as pl
from jax.experimental.pallas import tpu as pltpu


def _dyn_linear_kernel(x_ref, w_ref, o_ref, *, num_z):
    # x_ref: (TB, F) full-feature block; w_ref: (Z, Z) in (in, out) layout.
    x = x_ref[:, :num_z]  # static lane slice (first z of F lanes) — in-vreg, no extra DMA
    o_ref[...] = jnp.dot(
        x,
        w_ref[...],
        preferred_element_type=jnp.float32,
        precision=lax.Precision.HIGHEST,
    ).astype(o_ref.dtype)


def prepare_dynamics_weight(weight):
    """One-time parameter transform: PyTorch (out, in) -> (in, out) MXU layout.

    Do this once at init / param load so the per-call wrapper dispatches no
    transpose op.
    """
    return weight.T


# ~2 KiB of lane-padded, double-buffered VMEM per batch row (x + out, each
# padded to 128 lanes, 2 buffers) -> 8192 rows ~= 16 MiB, safe on all chips
# (v5e/v6e 128 MiB, v7x 64 MiB physical) once vmem_limit_bytes is raised.
_DEFAULT_MAX_BATCH_TILE = 8192
_LANE = 128


def dynamics_linear_no_action(x, w_t, num_z, *, max_batch_tile=_DEFAULT_MAX_BATCH_TILE):
    """Pallas equivalent of DynamicsLinearNoAction.forward.

    x:     (B, F) with F >= num_z   (latent z dims followed by action dims)
    w_t:   (num_z, num_z) weight ALREADY transposed to (in, out) layout
           (use prepare_dynamics_weight on the PyTorch nn.Linear weight once).
    returns (B, num_z)
    """
    B, F = x.shape
    Z = num_z
    assert w_t.shape == (Z, Z)
    assert F >= Z

    # --- Batch tile selection -------------------------------------------------
    # grid=1 whenever the tile fits the VMEM budget (no point splitting on a
    # single-TC chip); otherwise the largest tile from a descending candidate
    # list that evenly divides B — which also keeps the grid short and even so
    # v7x's two TensorCores both get work under the "parallel" semantics.
    if B <= max_batch_tile:
        TB = B
    else:
        TB = None
        for cand in (8192, 4096, 2048, 1024, 512, 256, 128):
            if cand <= max_batch_tile and B % cand == 0:
                TB = cand
                break
        if TB is None:
            TB = B  # no clean divisor: fall back to a single block
    grid = (pl.cdiv(B, TB),)

    # --- VMEM budget from lane-padded tile sizes -------------------------------
    itemsize = jnp.dtype(x.dtype).itemsize
    f_pad = pl.cdiv(F, _LANE) * _LANE          # x tile lanes padded to 128
    z_pad = pl.cdiv(Z, _LANE) * _LANE          # out tile lanes padded to 128
    tiles_bytes = TB * (f_pad + z_pad) * itemsize * 2      # double-buffered in + out
    w_bytes = z_pad * z_pad * jnp.dtype(w_t.dtype).itemsize * 2
    vmem_bytes = int(tiles_bytes + w_bytes + (4 << 20))    # + headroom
    vmem_bytes = min(max(vmem_bytes, 16 << 20), 32 << 20)  # sane on v5e..v7x

    kernel = functools.partial(_dyn_linear_kernel, num_z=Z)

    return pl.pallas_call(
        kernel,
        out_shape=jax.ShapeDtypeStruct((B, Z), x.dtype),
        grid_spec=pltpu.PrefetchScalarGridSpec(
            num_scalar_prefetch=0,
            grid=grid,
            in_specs=[
                # Full feature extent (F) per block: the z-slice happens
                # in-kernel, because a (TB, Z) block over a (B, F) array would
                # violate the (8,128)/full-dim rule (Z=32 is neither
                # 128-divisible nor == F).
                pl.BlockSpec((TB, F), lambda i: (i, 0)),
                # Constant block index -> weight stays VMEM-resident across steps.
                pl.BlockSpec((Z, Z), lambda i: (0, 0)),
            ],
            out_specs=pl.BlockSpec((TB, Z), lambda i: (i, 0)),
        ),
        compiler_params=pltpu.CompilerParams(
            dimension_semantics=("parallel",),
            vmem_limit_bytes=vmem_bytes,
        ),
    )(x, w_t)


if __name__ == "__main__":
    # Small shapes consistent with the module: latent z=32, action a=4, batch=8.
    B, Z, A = 8, 32, 4
    key = jax.random.PRNGKey(0)
    kx, kw, kx2 = jax.random.split(key, 3)

    # Input carries z latent dims (+ a extra action columns that forward ignores).
    x = jax.random.normal(kx, (B, Z + A), dtype=jnp.float32)

    # Deterministic nn.Linear(z, z, bias=False) init: U(-1/sqrt(z), 1/sqrt(z)).
    bound = 1.0 / (Z ** 0.5)
    W = jax.random.uniform(kw, (Z, Z), dtype=jnp.float32, minval=-bound, maxval=bound)
    W_t = prepare_dynamics_weight(W)  # one-time param transform (no per-call transpose)

    out = jax.block_until_ready(dynamics_linear_no_action(x, W_t, Z))
    ref = x[:, :Z] @ W.T
    assert out.shape == (B, Z)
    assert jnp.allclose(out, ref, atol=1e-5, rtol=1e-5), "mismatch vs reference (small B)"

    # Larger batch: default policy gives grid=1 (single block) on any chip.
    B2 = 1024
    x2 = jax.random.normal(kx2, (B2, Z + A), dtype=jnp.float32)
    out2 = jax.block_until_ready(dynamics_linear_no_action(x2, W_t, Z))
    ref2 = x2[:, :Z] @ W.T
    assert out2.shape == (B2, Z)
    assert jnp.allclose(out2, ref2, atol=1e-5, rtol=1e-5), "mismatch vs reference (grid=1 big B)"

    # Also exercise the multi-step (even-length) grid path by forcing a small tile cap.
    out3 = jax.block_until_ready(
        dynamics_linear_no_action(x2, W_t, Z, max_batch_tile=512))
    assert jnp.allclose(out3, ref2, atol=1e-5, rtol=1e-5), "mismatch vs reference (tiled B)"

    print("KERNEL_OK")
</pallas_src>

<mosaic_0001>
module attributes {stable_mosaic.version = 11 : i64} {
  func.func @_dyn_linear_kernel(%arg0: i32, %arg1: memref<8x36xf32, #tpu.memory_space<vmem>>, %arg2: memref<32x32xf32, #tpu.memory_space<vmem>>, %arg3: memref<8x32xf32, #tpu.memory_space<vmem>>) attributes {dimension_semantics = [#tpu.dimension_semantics<parallel>], iteration_bounds = array<i64: 1>, scalar_prefetch = 0 : i64, scratch_operands = 0 : i64, tpu.core_type = #tpu.core_type<tc>, window_params = [{transform_indices = @transform_0, window_bounds = array<i64: 8, 36>}, {pipeline_mode = #tpu.pipeline_mode<synchronous>, transform_indices = @transform_1, window_bounds = array<i64: 32, 32>}, {transform_indices = @transform_2, window_bounds = array<i64: 8, 32>}]} {
    %c0 = arith.constant 0 : index
    %c0_0 = arith.constant 0 : index
    %0 = vector.load %arg1[%c0, %c0_0] : memref<8x36xf32, #tpu.memory_space<vmem>>, vector<8x32xf32>
    %c0_1 = arith.constant 0 : index
    %c0_2 = arith.constant 0 : index
    %1 = vector.load %arg2[%c0_1, %c0_2] : memref<32x32xf32, #tpu.memory_space<vmem>>, vector<32x32xf32>
    %cst = arith.constant dense<0.000000e+00> : vector<8x32xf32>
    %2 = tpu.matmul %0, %1, %cst {dimension_numbers = #tpu.dot_dimension_numbers<[1], [0], [0], [1], [0, 0, 1, 1], [], []>, precision = #tpu.contract_precision<fp32>} : vector<8x32xf32>, vector<32x32xf32>, vector<8x32xf32> -> vector<8x32xf32>
    %c0_3 = arith.constant 0 : index
    %c0_4 = arith.constant 0 : index
    %3 = vector.load %arg3[%c0_3, %c0_4] : memref<8x32xf32, #tpu.memory_space<vmem>>, vector<8x32xf32>
    tpu.vector_store %arg3[%c0_3, %c0_4], %2 {strides = array<i32>} : memref<8x32xf32, #tpu.memory_space<vmem>>, vector<8x32xf32>,
    return
  }
  func.func @transform_0(%arg0: i32) -> (i32, i32) {
    %c0_i32 = arith.constant 0 : i32
    %c0_i32_0 = arith.constant 0 : i32
    return %arg0, %c0_i32 : i32, i32
  }
  func.func @transform_1(%arg0: i32) -> (i32, i32) {
    %c0_i32 = arith.constant 0 : i32
    %c0_i32_0 = arith.constant 0 : i32
    %c0_i32_1 = arith.constant 0 : i32
    return %c0_i32, %c0_i32_0 : i32, i32
  }
  func.func @transform_2(%arg0: i32) -> (i32, i32) {
    %c0_i32 = arith.constant 0 : i32
    %c0_i32_0 = arith.constant 0 : i32
    return %arg0, %c0_i32 : i32, i32
  }
}

</mosaic_0001>

<llo_original>
// kernel: tpu_custom_call.1
$region0: #{tpu_custom_call.1}
  #allocation0 [shape = 'u32[]', space=smem, size = 0x4, offset = 0x4, fixed_abs, tag = 'smem constant byte address 0x4 - core index']
  #allocation1 [shape = 'u32[144,128]{1,0:T(1,128)}', space=vmem, size = 0x12000, scoped, tag = 'internal scratch']
  %s0 = inlined_call_operand.hbm [shape: f32[8,36], index: 0, kind: input, shape index: {}]
  %s1 = inlined_call_operand.hbm [shape: f32[32,32], index: 1, kind: input, shape index: {}]
  %s2 = inlined_call_operand.hbm [shape: f32[8,32], index: 2, kind: output, shape index: {}]
  %s3 = sld [smem:[#allocation0]]
  $region26: #{tpu_custom_call.1} parent=0
    _
  %s5 = ssub.s32 1, %s3
  %s6 = scalar_select 0, %s5, %s3
  $region1: #{tpu_custom_call.1} parent=0
    #allocation2 [shape = 'u8[4096]{0}', space=vmem, size = 0x1000, scoped, tag = 'input window, operand 0, single buffered']
    #allocation3 [shape = 's32[1]{0}', space=sflag, size = 0x4, scoped, tag = 'scoped memory for tpu_custom_call.1']
    #allocation4 [shape = 's32[1]{0}', space=sflag, size = 0x4, scoped, tag = 'scoped memory for tpu_custom_call.1']
    #allocation5 [shape = 'u8[16384]{0}', space=vmem, size = 0x4000, scoped, tag = 'input window, operand 1, single buffered']
    #allocation6 [shape = 's32[1]{0}', space=sflag, size = 0x4, scoped, tag = 'scoped memory for tpu_custom_call.1']
    #allocation7 [shape = 'u8[4096]{0}', space=vmem, size = 0x1000, scoped, tag = 'output window, operand 0, single buffered']
    %7 = vsyncpa [#allocation3], 0
    %8 = vsyncpa [#allocation6], 0
    %9 = vsyncpa [#allocation4], 0
    // Predicated region
    $region2: #{tpu_custom_call.1} parent=1 // pred_check
      _
    $region3: #{tpu_custom_call.1} parent=1 // pred_check_branch
      %11 = sbr.rel (0) target = $region5
    $region4: #{tpu_custom_call.1} parent=1 // pred_region
      %s13 = ssub.s32 128, 128
      %14 = vsyncadd [#allocation3], %s13
      %s16 = sshll.u32 [#allocation2], 4
      %s17 = int_to_ptr.vmem [resolvable:$true] %s16
      %19 = dma.hbm_to_vmem [thread:$0]  %s0, 128, %s17, [#allocation3]
    $region5: #{tpu_custom_call.1} parent=1 // pred_fallthru
      _
    // Predicated region
    $region6: #{tpu_custom_call.1} parent=1 // pred_check
      _
    $region7: #{tpu_custom_call.1} parent=1 // pred_check_branch
      %21 = sbr.rel (0) target = $region9
    $region8: #{tpu_custom_call.1} parent=1 // pred_region
      %s23 = ssub.s32 512, 512
      %24 = vsyncadd [#allocation6], %s23
      %s25 = sshll.u32 [#allocation5], 4
      %s26 = int_to_ptr.vmem [resolvable:$true] %s25
      %31 = dma.hbm_to_vmem [thread:$0]  %s1, 512, %s26, [#allocation6], 128, 128, 8
    $region9: #{tpu_custom_call.1} parent=1 // pred_fallthru
      _
    // Predicated region
    $region10: #{tpu_custom_call.1} parent=1 // pred_check
      _
    $region11: #{tpu_custom_call.1} parent=1 // pred_check_branch
      %33 = sbr.rel (0) target = $region13
    $region12: #{tpu_custom_call.1} parent=1 // pred_region
      %34 = dma.done [#allocation3], 128
    $region13: #{tpu_custom_call.1} parent=1 // pred_fallthru
      _
    // Predicated region
    $region14: #{tpu_custom_call.1} parent=1 // pred_check
      _
    $region15: #{tpu_custom_call.1} parent=1 // pred_check_branch
      %36 = sbr.rel (0) target = $region17
    $region16: #{tpu_custom_call.1} parent=1 // pred_region
      %37 = dma.done [#allocation6], 512
    $region17: #{tpu_custom_call.1} parent=1 // pred_fallthru
      _
    %v38 = vld [vmem:[#allocation2] sm:$0xff]
    %v39 = vld [vmem:[#allocation5] sm:$0xff]
    %v40 = vld [vmem:[#allocation5 + $0x8] sm:$0xff]
    %v41 = vld [vmem:[#allocation5 + $0x10] sm:$0xff]
    %v42 = vld [vmem:[#allocation5 + $0x18] sm:$0xff]
    %vm43 = vcmask 261120
    %v45 = vsel %vm43, %v38, 0
    %47 = vmatprep.subr.mxu0 0.0
    %48 = vmatpush1.msra.mxu0 0.0
    %49 = vmatprep.subr.mxu0 0.0
    %50 = vmatpush1.msra.mxu0 0.0
    %51 = vmatprep.subr.mxu0 0.0
    %52 = vmatpush1.msra.mxu0 0.0
    %53 = vmatprep.subr.mxu0 0.0
    %54 = vmatpush1.msra.mxu0 0.0
    %55 = vmatprep.subr.mxu0 0.0
    %56 = vmatpush1.msra.mxu0 0.0
    %57 = vmatprep.subr.mxu0 0.0
    %58 = vmatpush1.msra.mxu0 0.0
    %59 = vmatprep.subr.mxu0 0.0
    %60 = vmatpush1.msra.mxu0 0.0
    %61 = vmatprep.subr.mxu0 0.0
    %62 = vmatpush1.msra.mxu0 0.0
    %63 = vmatprep.subr.mxu0 0.0
    %64 = vmatpush1.msra.mxu0 0.0
    %65 = vmatprep.subr.mxu0 0.0
    %66 = vmatpush1.msra.mxu0 0.0
    %67 = vmatprep.subr.mxu0 0.0
    %68 = vmatpush1.msra.mxu0 0.0
    %69 = vmatprep.subr.mxu0 0.0
    %70 = vmatpush1.msra.mxu0 0.0
    %71 = vmatprep.subr.mxu0 0.0
    %v72 = vand.u32 %v42, 4294901760
    %73 = vmatpush1.msra.mxu0 %v72
    %74 = vmatprep.subr.mxu0 0.0
    %v75 = vand.u32 %v41, 4294901760
    %76 = vmatpush1.msra.mxu0 %v75
    %77 = vmatprep.subr.mxu0 0.0
    %v78 = vand.u32 %v40, 4294901760
    %79 = vmatpush1.msra.mxu0 %v78
    %80 = vmatprep.subr.mxu0 0.0
    %v81 = vand.u32 %v39, 4294901760
    %82 = vmatpush1.msra.mxu0 %v81
    %83 = vmatprep.subr.mxu0 0.0
    %84 = vmatpush2.msra.mxu0 0.0
    %85 = vmatprep.subr.mxu0 0.0
    %86 = vmatpush2.msra.mxu0 0.0
    %87 = vmatprep.subr.mxu0 0.0
    %88 = vmatpush2.msra.mxu0 0.0
    %89 = vmatprep.subr.mxu0 0.0
    %90 = vmatpush2.msra.mxu0 0.0
    %91 = vmatprep.subr.mxu0 0.0
    %92 = vmatpush2.msra.mxu0 0.0
    %93 = vmatprep.subr.mxu0 0.0
    %94 = vmatpush2.msra.mxu0 0.0
    %95 = vmatprep.subr.mxu0 0.0
    %96 = vmatpush2.msra.mxu0 0.0
    %97 = vmatprep.subr.mxu0 0.0
    %98 = vmatpush2.msra.mxu0 0.0
    %99 = vmatprep.subr.mxu0 0.0
    %100 = vmatpush2.msra.mxu0 0.0
    %101 = vmatprep.subr.mxu0 0.0
    %102 = vmatpush2.msra.mxu0 0.0
    %103 = vmatprep.subr.mxu0 0.0
    %104 = vmatpush2.msra.mxu0 0.0
    %105 = vmatprep.subr.mxu0 0.0
    %106 = vmatpush2.msra.mxu0 0.0
    %107 = vmatprep.subr.mxu0 0.0
    %108 = vmatpush2.msra.mxu0 0.0
    %109 = vmatprep.subr.mxu0 0.0
    %110 = vmatpush2.msra.mxu0 0.0
    %111 = vmatprep.subr.mxu0 0.0
    %112 = vmatpush2.msra.mxu0 0.0
    %113 = vmatprep.subr.mxu0 0.0
    %114 = vmatpush2.msra.mxu0 0.0
    %115 = vmatprep.mubr.f32.mxu0 0.0
    %v116 = vand.u32 %v45, 4294901760
    %v117 = vsub.f32 %v45, %v116
    %v118 = vand.u32 %v117, 4294901760
    %v119 = vsub.f32 %v117, %v118
    %v120 = vand.u32 %v119, 4294901760
    %121 = vmatmul.mubr.f32.gmra.mxu0 %v120
    %v122 = vpop.f32.mrf.mxu0
    %v123 = vadd.f32 0.0, %v122
    %v124 = vpop.f32.mrf.mxu0
    %125 = vdwg.mxu0
    %126 = vmatprep.subr.mxu0 0.0
    %127 = vmatpush1.msra.mxu0 0.0
    %128 = vmatprep.subr.mxu0 0.0
    %129 = vmatpush1.msra.mxu0 0.0
    %130 = vmatprep.subr.mxu0 0.0
    %131 = vmatpush1.msra.mxu0 0.0
    %132 = vmatprep.subr.mxu0 0.0
    %133 = vmatpush1.msra.mxu0 0.0
    %134 = vmatprep.subr.mxu0 0.0
    %135 = vmatpush1.msra.mxu0 0.0
    %136 = vmatprep.subr.mxu0 0.0
    %137 = vmatpush1.msra.mxu0 0.0
    %138 = vmatprep.subr.mxu0 0.0
    %139 = vmatpush1.msra.mxu0 0.0
    %140 = vmatprep.subr.mxu0 0.0
    %141 = vmatpush1.msra.mxu0 0.0
    %142 = vmatprep.subr.mxu0 0.0
    %143 = vmatpush1.msra.mxu0 0.0
    %144 = vmatprep.subr.mxu0 0.0
    %145 = vmatpush1.msra.mxu0 0.0
    %146 = vmatprep.subr.mxu0 0.0
    %147 = vmatpush1.msra.mxu0 0.0
    %148 = vmatprep.subr.mxu0 0.0
    %149 = vmatpush1.msra.mxu0 0.0
    %150 = vmatprep.subr.mxu0 0.0
    %v151 = vand.u32 %v42, 4294901760
    %v152 = vsub.f32 %v42, %v151
    %v153 = vand.u32 %v152, 4294901760
    %v154 = vsub.f32 %v152, %v153
    %v155 = vand.u32 %v154, 4294901760
    %156 = vmatpush1.msra.mxu0 %v155
    %157 = vmatprep.subr.mxu0 0.0
    %v158 = vand.u32 %v41, 4294901760
    %v159 = vsub.f32 %v41, %v158
    %v160 = vand.u32 %v159, 4294901760
    %v161 = vsub.f32 %v159, %v160
    %v162 = vand.u32 %v161, 4294901760
    %163 = vmatpush1.msra.mxu0 %v162
    %164 = vmatprep.subr.mxu0 0.0
    %v165 = vand.u32 %v40, 4294901760
    %v166 = vsub.f32 %v40, %v165
    %v167 = vand.u32 %v166, 4294901760
    %v168 = vsub.f32 %v166, %v167
    %v169 = vand.u32 %v168, 4294901760
    %170 = vmatpush1.msra.mxu0 %v169
    %171 = vmatprep.subr.mxu0 0.0
    %v172 = vand.u32 %v39, 4294901760
    %v173 = vsub.f32 %v39, %v172
    %v174 = vand.u32 %v173, 4294901760
    %v175 = vsub.f32 %v173, %v174
    %v176 = vand.u32 %v175, 4294901760
    %177 = vmatpush1.msra.mxu0 %v176
    %178 = vmatprep.subr.mxu0 0.0
    %179 = vmatpush2.msra.mxu0 0.0
    %180 = vmatprep.subr.mxu0 0.0
    %181 = vmatpush2.msra.mxu0 0.0
    %182 = vmatprep.subr.mxu0 0.0
    %183 = vmatpush2.msra.mxu0 0.0
    %184 = vmatprep.subr.mxu0 0.0
    %185 = vmatpush2.msra.mxu0 0.0
    %186 = vmatprep.subr.mxu0 0.0
    %187 = vmatpush2.msra.mxu0 0.0
    %188 = vmatprep.subr.mxu0 0.0
    %189 = vmatpush2.msra.mxu0 0.0
    %190 = vmatprep.subr.mxu0 0.0
    %191 = vmatpush2.msra.mxu0 0.0
    %192 = vmatprep.subr.mxu0 0.0
    %193 = vmatpush2.msra.mxu0 0.0
    %194 = vmatprep.subr.mxu0 0.0
    %195 = vmatpush2.msra.mxu0 0.0
    %196 = vmatprep.subr.mxu0 0.0
    %197 = vmatpush2.msra.mxu0 0.0
    %198 = vmatprep.subr.mxu0 0.0
    %199 = vmatpush2.msra.mxu0 0.0
    %200 = vmatprep.subr.mxu0 0.0
    %201 = vmatpush2.msra.mxu0 0.0
    %202 = vmatprep.subr.mxu0 0.0
    %203 = vmatpush2.msra.mxu0 0.0
    %204 = vmatprep.subr.mxu0 0.0
    %205 = vmatpush2.msra.mxu0 0.0
    %206 = vmatprep.subr.mxu0 0.0
    %207 = vmatpush2.msra.mxu0 0.0
    %208 = vmatprep.subr.mxu0 0.0
    %209 = vmatpush2.msra.mxu0 0.0
    %210 = vmatprep.mubr.f32.mxu0 0.0
    %v211 = vand.u32 %v45, 4294901760
    %212 = vmatmul.mubr.f32.gmra.mxu0 %v211
    %v213 = vpop.f32.mrf.mxu0
    %v214 = vadd.f32 %v123, %v213
    %v215 = vpop.f32.mrf.mxu0
    %216 = vdwg.mxu0
    %217 = vmatprep.subr.mxu0 0.0
    %218 = vmatpush1.msra.mxu0 0.0
    %219 = vmatprep.subr.mxu0 0.0
    %220 = vmatpush1.msra.mxu0 0.0
    %221 = vmatprep.subr.mxu0 0.0
    %222 = vmatpush1.msra.mxu0 0.0
    %223 = vmatprep.subr.mxu0 0.0
    %224 = vmatpush1.msra.mxu0 0.0
    %225 = vmatprep.subr.mxu0 0.0
    %226 = vmatpush1.msra.mxu0 0.0
    %227 = vmatprep.subr.mxu0 0.0
    %228 = vmatpush1.msra.mxu0 0.0
    %229 = vmatprep.subr.mxu0 0.0
    %230 = vmatpush1.msra.mxu0 0.0
    %231 = vmatprep.subr.mxu0 0.0
    %232 = vmatpush1.msra.mxu0 0.0
    %233 = vmatprep.subr.mxu0 0.0
    %234 = vmatpush1.msra.mxu0 0.0
    %235 = vmatprep.subr.mxu0 0.0
    %236 = vmatpush1.msra.mxu0 0.0
    %237 = vmatprep.subr.mxu0 0.0
    %238 = vmatpush1.msra.mxu0 0.0
    %239 = vmatprep.subr.mxu0 0.0
    %240 = vmatpush1.msra.mxu0 0.0
    %241 = vmatprep.subr.mxu0 0.0
    %v242 = vand.u32 %v42, 4294901760
    %v243 = vsub.f32 %v42, %v242
    %244 = vmatpush1.msra.mxu0 %v243
    %245 = vmatprep.subr.mxu0 0.0
    %v246 = vand.u32 %v41, 4294901760
    %v247 = vsub.f32 %v41, %v246
    %248 = vmatpush1.msra.mxu0 %v247
    %249 = vmatprep.subr.mxu0 0.0
    %v250 = vand.u32 %v40, 4294901760
    %v251 = vsub.f32 %v40, %v250
    %252 = vmatpush1.msra.mxu0 %v251
    %253 = vmatprep.subr.mxu0 0.0
    %v254 = vand.u32 %v39, 4294901760
    %v255 = vsub.f32 %v39, %v254
    %256 = vmatpush1.msra.mxu0 %v255
    %257 = vmatprep.subr.mxu0 0.0
    %258 = vmatpush2.msra.mxu0 0.0
    %259 = vmatprep.subr.mxu0 0.0
    %260 = vmatpush2.msra.mxu0 0.0
    %261 = vmatprep.subr.mxu0 0.0
    %262 = vmatpush2.msra.mxu0 0.0
    %263 = vmatprep.subr.mxu0 0.0
    %264 = vmatpush2.msra.mxu0 0.0
    %265 = vmatprep.subr.mxu0 0.0
    %266 = vmatpush2.msra.mxu0 0.0
    %267 = vmatprep.subr.mxu0 0.0
    %268 = vmatpush2.msra.mxu0 0.0
    %269 = vmatprep.subr.mxu0 0.0
    %270 = vmatpush2.msra.mxu0 0.0
    %271 = vmatprep.subr.mxu0 0.0
    %272 = vmatpush2.msra.mxu0 0.0
    %273 = vmatprep.subr.mxu0 0.0
    %274 = vmatpush2.msra.mxu0 0.0
    %275 = vmatprep.subr.mxu0 0.0
    %276 = vmatpush2.msra.mxu0 0.0
    %277 = vmatprep.subr.mxu0 0.0
    %278 = vmatpush2.msra.mxu0 0.0
    %279 = vmatprep.subr.mxu0 0.0
    %280 = vmatpush2.msra.mxu0 0.0
    %281 = vmatprep.subr.mxu0 0.0
    %282 = vmatpush2.msra.mxu0 0.0
    %283 = vmatprep.subr.mxu0 0.0
    %284 = vmatpush2.msra.mxu0 0.0
    %285 = vmatprep.subr.mxu0 0.0
    %286 = vmatpush2.msra.mxu0 0.0
    %287 = vmatprep.subr.mxu0 0.0
    %288 = vmatpush2.msra.mxu0 0.0
    %289 = vmatprep.mubr.f32.mxu0 0.0
    %v290 = vand.u32 %v45, 4294901760
    %v291 = vsub.f32 %v45, %v290
    %292 = vmatmul.mubr.f32.gmra.mxu0 %v291
    %v293 = vpop.f32.mrf.mxu0
    %v294 = vadd.f32 %v214, %v293
    %v295 = vpop.f32.mrf.mxu0
    %296 = vdwg.mxu0
    %297 = vmatprep.subr.mxu0 0.0
    %298 = vmatpush1.msra.mxu0 0.0
    %299 = vmatprep.subr.mxu0 0.0
    %300 = vmatpush1.msra.mxu0 0.0
    %301 = vmatprep.subr.mxu0 0.0
    %302 = vmatpush1.msra.mxu0 0.0
    %303 = vmatprep.subr.mxu0 0.0
    %304 = vmatpush1.msra.mxu0 0.0
    %305 = vmatprep.subr.mxu0 0.0
    %306 = vmatpush1.msra.mxu0 0.0
    %307 = vmatprep.subr.mxu0 0.0
    %308 = vmatpush1.msra.mxu0 0.0
    %309 = vmatprep.subr.mxu0 0.0
    %310 = vmatpush1.msra.mxu0 0.0
    %311 = vmatprep.subr.mxu0 0.0
    %312 = vmatpush1.msra.mxu0 0.0
    %313 = vmatprep.subr.mxu0 0.0
    %314 = vmatpush1.msra.mxu0 0.0
    %315 = vmatprep.subr.mxu0 0.0
    %316 = vmatpush1.msra.mxu0 0.0
    %317 = vmatprep.subr.mxu0 0.0
    %318 = vmatpush1.msra.mxu0 0.0
    %319 = vmatprep.subr.mxu0 0.0
    %320 = vmatpush1.msra.mxu0 0.0
    %321 = vmatprep.subr.mxu0 0.0
    %v322 = vand.u32 %v42, 4294901760
    %323 = vmatpush1.msra.mxu0 %v322
    %324 = vmatprep.subr.mxu0 0.0
    %v325 = vand.u32 %v41, 4294901760
    %326 = vmatpush1.msra.mxu0 %v325
    %327 = vmatprep.subr.mxu0 0.0
    %v328 = vand.u32 %v40, 4294901760
    %329 = vmatpush1.msra.mxu0 %v328
    %330 = vmatprep.subr.mxu0 0.0
    %v331 = vand.u32 %v39, 4294901760
    %332 = vmatpush1.msra.mxu0 %v331
    %333 = vmatprep.subr.mxu0 0.0
    %334 = vmatpush2.msra.mxu0 0.0
    %335 = vmatprep.subr.mxu0 0.0
    %336 = vmatpush2.msra.mxu0 0.0
    %337 = vmatprep.subr.mxu0 0.0
    %338 = vmatpush2.msra.mxu0 0.0
    %339 = vmatprep.subr.mxu0 0.0
    %340 = vmatpush2.msra.mxu0 0.0
    %341 = vmatprep.subr.mxu0 0.0
    %342 = vmatpush2.msra.mxu0 0.0
    %343 = vmatprep.subr.mxu0 0.0
    %344 = vmatpush2.msra.mxu0 0.0
    %345 = vmatprep.subr.mxu0 0.0
    %346 = vmatpush2.msra.mxu0 0.0
    %347 = vmatprep.subr.mxu0 0.0
    %348 = vmatpush2.msra.mxu0 0.0
    %349 = vmatprep.subr.mxu0 0.0
    %350 = vmatpush2.msra.mxu0 0.0
    %351 = vmatprep.subr.mxu0 0.0
    %352 = vmatpush2.msra.mxu0 0.0
    %353 = vmatprep.subr.mxu0 0.0
    %354 = vmatpush2.msra.mxu0 0.0
    %355 = vmatprep.subr.mxu0 0.0
    %356 = vmatpush2.msra.mxu0 0.0
    %357 = vmatprep.subr.mxu0 0.0
    %358 = vmatpush2.msra.mxu0 0.0
    %359 = vmatprep.subr.mxu0 0.0
    %360 = vmatpush2.msra.mxu0 0.0
    %361 = vmatprep.subr.mxu0 0.0
    %362 = vmatpush2.msra.mxu0 0.0
    %363 = vmatprep.subr.mxu0 0.0
    %364 = vmatpush2.msra.mxu0 0.0
    %365 = vmatprep.mubr.f32.mxu0 0.0
    %v366 = vand.u32 %v45, 4294901760
    %v367 = vsub.f32 %v45, %v366
    %v368 = vand.u32 %v367, 4294901760
    %369 = vmatmul.mubr.f32.gmra.mxu0 %v368
    %v370 = vpop.f32.mrf.mxu0
    %v371 = vadd.f32 %v294, %v370
    %v372 = vpop.f32.mrf.mxu0
    %373 = vdwg.mxu0
    %374 = vmatprep.subr.mxu0 0.0
    %375 = vmatpush1.msra.mxu0 0.0
    %376 = vmatprep.subr.mxu0 0.0
    %377 = vmatpush1.msra.mxu0 0.0
    %378 = vmatprep.subr.mxu0 0.0
    %379 = vmatpush1.msra.mxu0 0.0
    %380 = vmatprep.subr.mxu0 0.0
    %381 = vmatpush1.msra.mxu0 0.0
    %382 = vmatprep.subr.mxu0 0.0
    %383 = vmatpush1.msra.mxu0 0.0
    %384 = vmatprep.subr.mxu0 0.0
    %385 = vmatpush1.msra.mxu0 0.0
    %386 = vmatprep.subr.mxu0 0.0
    %387 = vmatpush1.msra.mxu0 0.0
    %388 = vmatprep.subr.mxu0 0.0
    %389 = vmatpush1.msra.mxu0 0.0
    %390 = vmatprep.subr.mxu0 0.0
    %391 = vmatpush1.msra.mxu0 0.0
    %392 = vmatprep.subr.mxu0 0.0
    %393 = vmatpush1.msra.mxu0 0.0
    %394 = vmatprep.subr.mxu0 0.0
    %395 = vmatpush1.msra.mxu0 0.0
    %396 = vmatprep.subr.mxu0 0.0
    %397 = vmatpush1.msra.mxu0 0.0
    %398 = vmatprep.subr.mxu0 0.0
    %v399 = vand.u32 %v42, 4294901760
    %v400 = vsub.f32 %v42, %v399
    %v401 = vand.u32 %v400, 4294901760
    %402 = vmatpush1.msra.mxu0 %v401
    %403 = vmatprep.subr.mxu0 0.0
    %v404 = vand.u32 %v41, 4294901760
    %v405 = vsub.f32 %v41, %v404
    %v406 = vand.u32 %v405, 4294901760
    %407 = vmatpush1.msra.mxu0 %v406
    %408 = vmatprep.subr.mxu0 0.0
    %v409 = vand.u32 %v40, 4294901760
    %v410 = vsub.f32 %v40, %v409
    %v411 = vand.u32 %v410, 4294901760
    %412 = vmatpush1.msra.mxu0 %v411
    %413 = vmatprep.subr.mxu0 0.0
    %v414 = vand.u32 %v39, 4294901760
    %v415 = vsub.f32 %v39, %v414
    %v416 = vand.u32 %v415, 4294901760
    %417 = vmatpush1.msra.mxu0 %v416
    %418 = vmatprep.subr.mxu0 0.0
    %419 = vmatpush2.msra.mxu0 0.0
    %420 = vmatprep.subr.mxu0 0.0
    %421 = vmatpush2.msra.mxu0 0.0
    %422 = vmatprep.subr.mxu0 0.0
    %423 = vmatpush2.msra.mxu0 0.0
    %424 = vmatprep.subr.mxu0 0.0
    %425 = vmatpush2.msra.mxu0 0.0
    %426 = vmatprep.subr.mxu0 0.0
    %427 = vmatpush2.msra.mxu0 0.0
    %428 = vmatprep.subr.mxu0 0.0
    %429 = vmatpush2.msra.mxu0 0.0
    %430 = vmatprep.subr.mxu0 0.0
    %431 = vmatpush2.msra.mxu0 0.0
    %432 = vmatprep.subr.mxu0 0.0
    %433 = vmatpush2.msra.mxu0 0.0
    %434 = vmatprep.subr.mxu0 0.0
    %435 = vmatpush2.msra.mxu0 0.0
    %436 = vmatprep.subr.mxu0 0.0
    %437 = vmatpush2.msra.mxu0 0.0
    %438 = vmatprep.subr.mxu0 0.0
    %439 = vmatpush2.msra.mxu0 0.0
    %440 = vmatprep.subr.mxu0 0.0
    %441 = vmatpush2.msra.mxu0 0.0
    %442 = vmatprep.subr.mxu0 0.0
    %443 = vmatpush2.msra.mxu0 0.0
    %444 = vmatprep.subr.mxu0 0.0
    %445 = vmatpush2.msra.mxu0 0.0
    %446 = vmatprep.subr.mxu0 0.0
    %447 = vmatpush2.msra.mxu0 0.0
    %448 = vmatprep.subr.mxu0 0.0
    %449 = vmatpush2.msra.mxu0 0.0
    %450 = vmatprep.mubr.f32.mxu0 0.0
    %v451 = vand.u32 %v45, 4294901760
    %452 = vmatmul.mubr.f32.gmra.mxu0 %v451
    %v453 = vpop.f32.mrf.mxu0
    %v454 = vadd.f32 %v371, %v453
    %v455 = vpop.f32.mrf.mxu0
    %456 = vdwg.mxu0
    %457 = vmatprep.subr.mxu0 0.0
    %458 = vmatpush1.msra.mxu0 0.0
    %459 = vmatprep.subr.mxu0 0.0
    %460 = vmatpush1.msra.mxu0 0.0
    %461 = vmatprep.subr.mxu0 0.0
    %462 = vmatpush1.msra.mxu0 0.0
    %463 = vmatprep.subr.mxu0 0.0
    %464 = vmatpush1.msra.mxu0 0.0
    %465 = vmatprep.subr.mxu0 0.0
    %466 = vmatpush1.msra.mxu0 0.0
    %467 = vmatprep.subr.mxu0 0.0
    %468 = vmatpush1.msra.mxu0 0.0
    %469 = vmatprep.subr.mxu0 0.0
    %470 = vmatpush1.msra.mxu0 0.0
    %471 = vmatprep.subr.mxu0 0.0
    %472 = vmatpush1.msra.mxu0 0.0
    %473 = vmatprep.subr.mxu0 0.0
    %474 = vmatpush1.msra.mxu0 0.0
    %475 = vmatprep.subr.mxu0 0.0
    %476 = vmatpush1.msra.mxu0 0.0
    %477 = vmatprep.subr.mxu0 0.0
    %478 = vmatpush1.msra.mxu0 0.0
    %479 = vmatprep.subr.mxu0 0.0
    %480 = vmatpush1.msra.mxu0 0.0
    %481 = vmatprep.subr.mxu0 0.0
    %v482 = vand.u32 %v42, 4294901760
    %483 = vmatpush1.msra.mxu0 %v482
    %484 = vmatprep.subr.mxu0 0.0
    %v485 = vand.u32 %v41, 4294901760
    %486 = vmatpush1.msra.mxu0 %v485
    %487 = vmatprep.subr.mxu0 0.0
    %v488 = vand.u32 %v40, 4294901760
    %489 = vmatpush1.msra.mxu0 %v488
    %490 = vmatprep.subr.mxu0 0.0
    %v491 = vand.u32 %v39, 4294901760
    %492 = vmatpush1.msra.mxu0 %v491
    %493 = vmatprep.subr.mxu0 0.0
    %494 = vmatpush2.msra.mxu0 0.0
    %495 = vmatprep.subr.mxu0 0.0
    %496 = vmatpush2.msra.mxu0 0.0
    %497 = vmatprep.subr.mxu0 0.0
    %498 = vmatpush2.msra.mxu0 0.0
    %499 = vmatprep.subr.mxu0 0.0
    %500 = vmatpush2.msra.mxu0 0.0
    %501 = vmatprep.subr.mxu0 0.0
    %502 = vmatpush2.msra.mxu0 0.0
    %503 = vmatprep.subr.mxu0 0.0
    %504 = vmatpush2.msra.mxu0 0.0
    %505 = vmatprep.subr.mxu0 0.0
    %506 = vmatpush2.msra.mxu0 0.0
    %507 = vmatprep.subr.mxu0 0.0
    %508 = vmatpush2.msra.mxu0 0.0
    %509 = vmatprep.subr.mxu0 0.0
    %510 = vmatpush2.msra.mxu0 0.0
    %511 = vmatprep.subr.mxu0 0.0
    %512 = vmatpush2.msra.mxu0 0.0
    %513 = vmatprep.subr.mxu0 0.0
    %514 = vmatpush2.msra.mxu0 0.0
    %515 = vmatprep.subr.mxu0 0.0
    %516 = vmatpush2.msra.mxu0 0.0
    %517 = vmatprep.subr.mxu0 0.0
    %518 = vmatpush2.msra.mxu0 0.0
    %519 = vmatprep.subr.mxu0 0.0
    %520 = vmatpush2.msra.mxu0 0.0
    %521 = vmatprep.subr.mxu0 0.0
    %522 = vmatpush2.msra.mxu0 0.0
    %523 = vmatprep.subr.mxu0 0.0
    %524 = vmatpush2.msra.mxu0 0.0
    %525 = vmatprep.mubr.f32.mxu0 0.0
    %v526 = vand.u32 %v45, 4294901760
    %527 = vmatmul.mubr.f32.gmra.mxu0 %v526
    %v528 = vpop.f32.mrf.mxu0
    %v529 = vadd.f32 %v454, %v528
    %v530 = vpop.f32.mrf.mxu0
    %531 = vdwg.mxu0
    %532 = vst.msk [vmem:[#allocation7] sm:$0xff] %vm43, %v529
    // Predicated region
    $region18: #{tpu_custom_call.1} parent=1 // pred_check
      _
    $region19: #{tpu_custom_call.1} parent=1 // pred_check_branch
      %534 = sbr.rel (0) target = $region21
    $region20: #{tpu_custom_call.1} parent=1 // pred_region
      %s536 = ssub.s32 128, 128
      %537 = vsyncadd [#allocation4], %s536
      %s539 = sshll.u32 [#allocation7], 4
      %s540 = int_to_ptr.vmem [resolvable:$true] %s539
      %542 = dma.vmem_to_hbm [thread:$0]  %s540, 128, %s2, [#allocation4]
    $region21: #{tpu_custom_call.1} parent=1 // pred_fallthru
      _
    // Predicated region
    $region22: #{tpu_custom_call.1} parent=1 // pred_check
      _
    $region23: #{tpu_custom_call.1} parent=1 // pred_check_branch
      %544 = sbr.rel (0) target = $region25
    $region24: #{tpu_custom_call.1} parent=1 // pred_region
      %545 = dma.done [#allocation4], 128
    $region25: #{tpu_custom_call.1} parent=1 // pred_fallthru
      _
    %546 = vsyncpa [#allocation3], 1
    %547 = vsyncpa [#allocation6], 1
    %548 = vsyncpa [#allocation4], 1

</llo_original>
